<compile_context>
chip_gen: v6e
topology: v6e:2x2x1
jax: 0.10.0
libtpu: 0.0.40
codegen_flags: <defaults>
</compile_context>

<pallas_src>
import functools

import jax
import jax.numpy as jnp
import numpy as np
from jax.experimental import pallas as pl
from jax.experimental.pallas import tpu as pltpu

EPSILON = 1e-5   # stands in for constants.EPSILON in the reference code
LAMBDA_ = 1.0    # self.lambda_ in the module


def fused_gaussian_loss_kernel(lm_ref, gt_ref, out_ref, *, num_stages, true_count):
    """Computes per-stage [loss_term1; loss_term2] for every stage in one shot.

    lm_ref:  (5*S, BN_pad) f32, channel-major rows: row = c*S + s with channels
             c = [mu_x, mu_y, L00, L10, L11].
    gt_ref:  (2, BN_pad) f32, rows = [gt_x, gt_y] (broadcast over stages).
    out_ref: (2*S, 1) f32: rows 0..S-1 = loss_term1 per stage,
                           rows S..2S-1 = loss_term2 per stage.
    """
    S = num_stages
    lm = lm_ref[...]                       # (5S, BN_pad)
    mu_x = lm[0 * S:1 * S]                 # (S, BN_pad)
    mu_y = lm[1 * S:2 * S]
    l00 = lm[2 * S:3 * S]
    l10 = lm[3 * S:4 * S]
    l11 = lm[4 * S:5 * S]

    gt = gt_ref[...]                       # (2, BN_pad)
    gx = gt[0:1]                           # (1, BN_pad) -> broadcasts over stages
    gy = gt[1:2]

    dx = gx - mu_x
    dy = gy - mu_y

    # Sigma = L @ L^T is symmetric: [[s00, s01], [s01, s11]]
    s00 = l00 * l00
    l11sq = l11 * l11
    s11 = l10 * l10 + l11sq
    s01 = l00 * l10

    # det(Sigma) = (l00*l11)^2 exactly (s01^2 term cancels algebraically);
    # EPSILON added to the squared product, as in the reference.
    det = s00 * l11sq + EPSILON

    # Approximate reciprocal on the (otherwise idle) EUP + one Newton step
    # recovers full f32 accuracy: r1 = r0 * (2 - det*r0).
    r = pl.reciprocal(det, approx=True)
    inv_det = r * (2.0 - det * r)

    # Mahalanobis distance (gt-mu)^T Sigma^{-1} (gt-mu) with Sigma^{-1}=adj/det,
    # written in symmetric form (no duplicate s10/i10 multiplies).
    quad = s11 * (dx * dx) + s00 * (dy * dy) - (s01 + s01) * (dx * dy)

    # loss_term1 = -mean(-0.5*log(det))            = mean(0.5*log(det))
    # loss_term2 = -lambda*mean(-0.5*quad*inv_det) = mean(0.5*lambda*quad*inv_det)
    contrib1 = 0.5 * jnp.log(det)                       # (S, BN_pad)
    contrib2 = (0.5 * LAMBDA_) * quad * inv_det         # (S, BN_pad)

    both = jnp.concatenate([contrib1, contrib2], axis=0)   # (2S, BN_pad)

    # Exact masking of the padded lanes, then a single lane reduction.
    lane = jax.lax.broadcasted_iota(jnp.int32, (1, both.shape[-1]), 1)
    mask = (lane < true_count).astype(both.dtype)           # (1, BN_pad)
    sums = jnp.sum(both * mask, axis=-1, keepdims=True)     # (2S, 1)
    out_ref[...] = sums * (1.0 / true_count)                # one full store


@jax.jit
def _face_align_loss_impl(lm_tuple, ground_truth):
    """Entire forward in one XLA program.

    lm_tuple: tuple of S arrays, each (B, N, 5).
    ground_truth: (B, N, >=2).
    """
    S = len(lm_tuple)
    lm_stack = jnp.stack([lm.astype(jnp.float32) for lm in lm_tuple], axis=0)  # (S,B,N,5)
    _, B, N, _ = lm_stack.shape
    BN = B * N
    BN_pad = ((BN + 127) // 128) * 128

    # Channel-major 2-D slab: row = c*S + s.  One transpose for ALL stages.
    lm_cf = jnp.transpose(lm_stack, (3, 0, 1, 2)).reshape(5 * S, BN)
    gt_cf = jnp.transpose(ground_truth[..., :2].astype(jnp.float32),
                          (2, 0, 1)).reshape(2, BN)

    pad = BN_pad - BN
    if pad:
        # Zero padding is safe: det = EPSILON > 0 and quad = 0 on padded lanes,
        # and the kernel masks them out exactly anyway.
        lm_cf = jnp.pad(lm_cf, ((0, 0), (0, pad)))
        gt_cf = jnp.pad(gt_cf, ((0, 0), (0, pad)))

    kernel = functools.partial(fused_gaussian_loss_kernel,
                               num_stages=S, true_count=BN)
    sums = pl.pallas_call(
        kernel,
        out_shape=jax.ShapeDtypeStruct((2 * S, 1), jnp.float32),
        # Grid-less call: whole working set (a few KB) resident in VMEM,
        # no size-1-grid pipelining machinery.
        in_specs=[
            pl.BlockSpec(memory_space=pltpu.MemorySpace.VMEM),
            pl.BlockSpec(memory_space=pltpu.MemorySpace.VMEM),
        ],
        out_specs=pl.BlockSpec(memory_space=pltpu.MemorySpace.VMEM),
    )(lm_cf, gt_cf)                                           # (2S, 1)

    t1_stages = sums[0:S, 0]          # (S,)
    t2_stages = sums[S:2 * S, 0]      # (S,)
    stage_totals = t1_stages + t2_stages
    loss_term1 = jnp.sum(t1_stages)
    loss_term2 = jnp.sum(t2_stages)
    loss = loss_term1 + loss_term2

    # Build the per-stage scalar pytrees INSIDE jit: all slicing fuses into the
    # same program -> one dispatch total, no host-side epilogue launches.
    return (loss,
            tuple(stage_totals[s] for s in range(S)),
            loss_term1,
            loss_term2,
            tuple(t1_stages[s] for s in range(S)),
            tuple(t2_stages[s] for s in range(S)))


def face_align_loss(list_of_landmarks, ground_truth):
    """Mirrors FaceAlignLoss.forward (laplacian=False, is_covariance=False)."""
    (loss, loss_stages, loss_term1, loss_term2,
     t1_stages, t2_stages) = _face_align_loss_impl(tuple(list_of_landmarks),
                                                   ground_truth)
    return (loss, list(loss_stages), loss_term1, loss_term2,
            list(t1_stages), list(t2_stages))


def _reference_stage(landmarks, ground_truth):
    """Plain-JAX mirror of PyTorch forward_one_stage for correctness checking."""
    l00 = landmarks[:, :, 2]
    l10 = landmarks[:, :, 3]
    l11 = landmarks[:, :, 4]
    s00 = l00 * l00
    s01 = l00 * l10
    s11 = l10 * l10 + l11 * l11
    det = s00 * s11 - s01 * s01 + EPSILON
    dx = ground_truth[:, :, 0] - landmarks[:, :, 0]
    dy = ground_truth[:, :, 1] - landmarks[:, :, 1]
    maha = (dx * (s11 * dx - s01 * dy) + dy * (-s01 * dx + s00 * dy)) / det
    lp1 = -0.5 * jnp.log(det)
    lp2 = -0.5 * maha
    t1 = -jnp.mean(jnp.mean(lp1, axis=1))
    t2 = -LAMBDA_ * jnp.mean(jnp.mean(lp2, axis=1))
    return t1, t2, t1 + t2


if __name__ == "__main__":
    key = jax.random.PRNGKey(0)
    B, N, STAGES = 2, 68, 2

    k_mu, k_l, k_gt = jax.random.split(key, 3)
    list_of_landmarks = []
    for s in range(STAGES):
        km, kl = jax.random.split(jax.random.fold_in(k_mu, s))
        mu = jax.random.normal(km, (B, N, 2), dtype=jnp.float32) * 4.0
        # Cholesky entries: keep diagonals strictly positive so Sigma is PD.
        chol = jax.random.uniform(kl, (B, N, 3), dtype=jnp.float32,
                                  minval=-0.3, maxval=0.3)
        chol = chol.at[:, :, 0].set(0.5 + jnp.abs(chol[:, :, 0]))
        chol = chol.at[:, :, 2].set(0.5 + jnp.abs(chol[:, :, 2]))
        list_of_landmarks.append(jnp.concatenate([mu, chol], axis=-1))  # (B, N, 5)

    gt_xy = jax.random.normal(k_gt, (B, N, 2), dtype=jnp.float32) * 4.0
    gt_occ = jnp.zeros((B, N, 1), dtype=jnp.float32)  # occlusion flag: unused by forward
    ground_truth = jnp.concatenate([gt_xy, gt_occ], axis=-1)             # (B, N, 3)

    (loss, loss_stages, loss_t1, loss_t2,
     loss_t1_stages, loss_t2_stages) = face_align_loss(list_of_landmarks, ground_truth)
    loss = jax.block_until_ready(loss)

    # Verify against a plain-JAX reference implementation (per stage and totals).
    ref_loss = 0.0
    ref_t1_total = 0.0
    ref_t2_total = 0.0
    for s, lm in enumerate(list_of_landmarks):
        rt1, rt2, rg = _reference_stage(lm, ground_truth)
        assert np.allclose(np.asarray(loss_t1_stages[s]), np.asarray(rt1),
                           rtol=1e-4, atol=1e-4), (s, loss_t1_stages[s], rt1)
        assert np.allclose(np.asarray(loss_t2_stages[s]), np.asarray(rt2),
                           rtol=1e-4, atol=1e-4), (s, loss_t2_stages[s], rt2)
        assert np.allclose(np.asarray(loss_stages[s]), np.asarray(rg),
                           rtol=1e-4, atol=1e-4), (s, loss_stages[s], rg)
        ref_loss = ref_loss + rg
        ref_t1_total = ref_t1_total + rt1
        ref_t2_total = ref_t2_total + rt2

    assert np.allclose(np.asarray(loss), np.asarray(ref_loss),
                       rtol=1e-4, atol=1e-4), (loss, ref_loss)
    assert np.allclose(np.asarray(loss_t1), np.asarray(ref_t1_total),
                       rtol=1e-4, atol=1e-4), (loss_t1, ref_t1_total)
    assert np.allclose(np.asarray(loss_t2), np.asarray(ref_t2_total),
                       rtol=1e-4, atol=1e-4), (loss_t2, ref_t2_total)

    print("KERNEL_OK")
</pallas_src>

<mosaic_0001>
module attributes {stable_mosaic.version = 11 : i64} {
  func.func @fused_gaussian_loss_kernel(%arg0: memref<10x256xf32, #tpu.memory_space<vmem>>, %arg1: memref<2x256xf32, #tpu.memory_space<vmem>>, %arg2: memref<4x1xf32, #tpu.memory_space<vmem>>) attributes {dimension_semantics = [], scalar_prefetch = 0 : i64, scratch_operands = 0 : i64, tpu.core_type = #tpu.core_type<tc>} {
    %c0 = arith.constant 0 : index
    %c0_0 = arith.constant 0 : index
    %0 = vector.load %arg0[%c0, %c0_0] : memref<10x256xf32, #tpu.memory_space<vmem>>, vector<10x256xf32>
    %1 = vector.extract_strided_slice %0 {offsets = [0, 0], sizes = [2, 256], strides = [1, 1]} : vector<10x256xf32> to vector<2x256xf32>
    %2 = vector.extract_strided_slice %0 {offsets = [2, 0], sizes = [2, 256], strides = [1, 1]} : vector<10x256xf32> to vector<2x256xf32>
    %3 = vector.extract_strided_slice %0 {offsets = [4, 0], sizes = [2, 256], strides = [1, 1]} : vector<10x256xf32> to vector<2x256xf32>
    %4 = vector.extract_strided_slice %0 {offsets = [6, 0], sizes = [2, 256], strides = [1, 1]} : vector<10x256xf32> to vector<2x256xf32>
    %5 = vector.extract_strided_slice %0 {offsets = [8, 0], sizes = [2, 256], strides = [1, 1]} : vector<10x256xf32> to vector<2x256xf32>
    %c0_1 = arith.constant 0 : index
    %c0_2 = arith.constant 0 : index
    %6 = vector.load %arg1[%c0_1, %c0_2] : memref<2x256xf32, #tpu.memory_space<vmem>>, vector<2x256xf32>
    %7 = vector.extract_strided_slice %6 {offsets = [0, 0], sizes = [1, 256], strides = [1, 1]} : vector<2x256xf32> to vector<1x256xf32>
    %8 = vector.extract_strided_slice %6 {offsets = [1, 0], sizes = [1, 256], strides = [1, 1]} : vector<2x256xf32> to vector<1x256xf32>
    %9 = vector.broadcast %7 : vector<1x256xf32> to vector<2x256xf32>
    %10 = arith.subf %9, %1 : vector<2x256xf32>
    %11 = vector.broadcast %8 : vector<1x256xf32> to vector<2x256xf32>
    %12 = arith.subf %11, %2 : vector<2x256xf32>
    %13 = arith.mulf %3, %3 : vector<2x256xf32>
    %14 = arith.mulf %5, %5 : vector<2x256xf32>
    %15 = arith.mulf %4, %4 : vector<2x256xf32>
    %16 = arith.addf %15, %14 : vector<2x256xf32>
    %17 = arith.mulf %3, %4 : vector<2x256xf32>
    %18 = arith.mulf %13, %14 : vector<2x256xf32>
    %cst = arith.constant 9.99999974E-6 : f32
    %19 = vector.broadcast %cst : f32 to vector<2x256xf32>
    %20 = arith.addf %18, %19 : vector<2x256xf32>
    %21 = tpu.reciprocal %20 {approx = true} : vector<2x256xf32> -> vector<2x256xf32>
    %22 = arith.mulf %20, %21 : vector<2x256xf32>
    %cst_3 = arith.constant 2.000000e+00 : f32
    %23 = vector.broadcast %cst_3 : f32 to vector<2x256xf32>
    %24 = arith.subf %23, %22 : vector<2x256xf32>
    %25 = arith.mulf %21, %24 : vector<2x256xf32>
    %26 = arith.mulf %10, %10 : vector<2x256xf32>
    %27 = arith.mulf %16, %26 : vector<2x256xf32>
    %28 = arith.mulf %12, %12 : vector<2x256xf32>
    %29 = arith.mulf %13, %28 : vector<2x256xf32>
    %30 = arith.addf %27, %29 : vector<2x256xf32>
    %31 = arith.addf %17, %17 : vector<2x256xf32>
    %32 = arith.mulf %10, %12 : vector<2x256xf32>
    %33 = arith.mulf %31, %32 : vector<2x256xf32>
    %34 = arith.subf %30, %33 : vector<2x256xf32>
    %35 = math.log %20 : vector<2x256xf32>
    %cst_4 = arith.constant 5.000000e-01 : f32
    %36 = vector.broadcast %cst_4 : f32 to vector<2x256xf32>
    %37 = arith.mulf %36, %35 : vector<2x256xf32>
    %cst_5 = arith.constant 5.000000e-01 : f32
    %38 = vector.broadcast %cst_5 : f32 to vector<2x256xf32>
    %39 = arith.mulf %38, %34 : vector<2x256xf32>
    %40 = arith.mulf %39, %25 : vector<2x256xf32>
    %41 = tpu.concatenate %37, %40 in 0 : vector<2x256xf32>, vector<2x256xf32> -> vector<4x256xf32>
    %42 = tpu.iota {dimensions = array<i32: 1>} : vector<1x256xi32>
    %c136_i32 = arith.constant 136 : i32
    %43 = vector.broadcast %c136_i32 : i32 to vector<1x256xi32>
    %44 = arith.cmpi slt, %42, %43 : vector<1x256xi32>
    %45 = arith.extui %44 : vector<1x256xi1> to vector<1x256xi32>
    %46 = arith.sitofp %45 : vector<1x256xi32> to vector<1x256xf32>
    %47 = vector.broadcast %46 : vector<1x256xf32> to vector<4x256xf32>
    %48 = arith.mulf %41, %47 : vector<4x256xf32>
    %cst_6 = arith.constant dense<0.000000e+00> : vector<4xf32>
    %49 = vector.multi_reduction <add>, %48, %cst_6 [1] : vector<4x256xf32> to vector<4xf32>
    %50 = vector.shape_cast %49 : vector<4xf32> to vector<4x1xf32>
    %cst_7 = arith.constant 0.0073529412 : f32
    %51 = vector.broadcast %cst_7 : f32 to vector<4x1xf32>
    %52 = arith.mulf %50, %51 : vector<4x1xf32>
    %c0_8 = arith.constant 0 : index
    %c0_9 = arith.constant 0 : index
    %53 = vector.load %arg2[%c0_8, %c0_9] : memref<4x1xf32, #tpu.memory_space<vmem>>, vector<4x1xf32>
    tpu.vector_store %arg2[%c0_8, %c0_9], %52 {strides = array<i32>} : memref<4x1xf32, #tpu.memory_space<vmem>>, vector<4x1xf32>,
    return
  }
}

</mosaic_0001>

<llo_original>
// kernel: _face_align_loss_impl.1
$region0: #{_face_align_loss_impl.1}
  #allocation0 [shape = 'u32[]', space=smem, size = 0x4, offset = 0x4, fixed_abs, tag = 'smem constant byte address 0x4 - core index']
  #allocation1 [shape = 'u32[144,128]{1,0:T(1,128)}', space=vmem, size = 0x12000, scoped, tag = 'internal scratch']
  %s0 = inlined_call_operand.vmem [shape: f32[10,256], index: 0, kind: input, shape index: {}]
  %s1 = inlined_call_operand.vmem [shape: f32[2,256], index: 1, kind: input, shape index: {}]
  %s2 = inlined_call_operand.vmem [shape: f32[4,1], index: 2, kind: output, shape index: {}]
  %s3 = sld [smem:[#allocation0]]
  $region18: #{_face_align_loss_impl.1} parent=0
    _
  %s5 = ssub.s32 1, %s3
  %s6 = scalar_select 0, %s5, %s3
  // Predicated region
  $region2: #{_face_align_loss_impl.1} parent=0 // pred_check
    _
  $region3: #{_face_align_loss_impl.1} parent=0 // pred_check_branch
    %8 = sbr.rel (0) target = $region5
  $region4: #{_face_align_loss_impl.1} parent=0 // pred_region
    _
  $region5: #{_face_align_loss_impl.1} parent=0 // pred_fallthru
    _
  // Predicated region
  $region6: #{_face_align_loss_impl.1} parent=0 // pred_check
    _
  $region7: #{_face_align_loss_impl.1} parent=0 // pred_check_branch
    %10 = sbr.rel (0) target = $region9
  $region8: #{_face_align_loss_impl.1} parent=0 // pred_region
    _
  $region9: #{_face_align_loss_impl.1} parent=0 // pred_fallthru
    _
  %v11 = vld [vmem:[%s0] sm:$0xff]
  %v12 = vld [vmem:[%s0 + $0x8] sm:$0xff]
  %v13 = vld [vmem:[%s0 + $0x10] sm:$0x3]
  %v14 = vld [vmem:[%s0 + $0x18] sm:$0x3]
  %v15 = vld [vmem:[%s1] sm:$0xf]
  %v17 = vlaneseq
  %v18 = vshrl.u32 %v17, 7
  %v19 = vsub.s32 0, %v18
  %v20 = vrot.slane %v15, %v19
  %v21 = vlaneseq
  %v22 = vshrl.u32 %v21, 7
  %v23 = vsub.s32 2, %v22
  %v24 = vrot.slane %v15, %v23
  %v27 = vlaneseq
  %v28 = vshrl.u32 %v27, 7
  %v29 = vsub.s32 0, %v28
  %v30 = vrot.slane %v20, %v29
  %v31 = vlaneseq
  %v32 = vshrl.u32 %v31, 7
  %v33 = vsub.s32 0, %v32
  %v34 = vrot.slane %v24, %v33
  %v35 = vsub.f32 %v30, %v11
  %v36 = vsub.f32 %v34, %v12
  %v37 = vlaneseq
  %v38 = vshrl.u32 %v37, 7
  %v39 = vsub.s32 1, %v38
  %v40 = vrot.slane %v15, %v39
  %v41 = vlaneseq
  %v42 = vshrl.u32 %v41, 7
  %v43 = vsub.s32 3, %v42
  %v44 = vrot.slane %v15, %v43
  %v47 = vlaneseq
  %v48 = vshrl.u32 %v47, 7
  %v49 = vsub.s32 1, %v48
  %v50 = vrot.slane %v40, %v49
  %v51 = vlaneseq
  %v52 = vshrl.u32 %v51, 7
  %v53 = vsub.s32 1, %v52
  %v54 = vrot.slane %v44, %v53
  %v55 = vsub.f32 %v50, %v11
  %v56 = vsub.f32 %v54, %v12
  %v57 = vmul.f32 %v11, %v11
  %v58 = vmul.f32 %v12, %v12
  %v59 = vmul.f32 %v13, %v13
  %v60 = vmul.f32 %v14, %v14
  %v63 = vrot.slane %v59, 2
  %v64 = vrot.slane %v60, 2
  %v67 = vadd.f32 %v57, %v63
  %v68 = vadd.f32 %v58, %v64
  %v71 = vrot.slane %v11, 2
  %v72 = vrot.slane %v12, 2
  %v75 = vmul.f32 %v11, %v71
  %v76 = vmul.f32 %v12, %v72
  %v77 = vrot.slane %v59, 4
  %v78 = vrot.slane %v60, 4
  %v81 = vmul.f32 %v57, %v77
  %v82 = vmul.f32 %v58, %v78
  %v83 = vadd.f32 %v81, 1e-05
  %v84 = vadd.f32 %v82, 1e-05
  %v85 = vrcp.pop %v83
  %v86 = vrcp.pop %v84
  %v87 = vmul.f32 %v83, %v85
  %v88 = vmul.f32 %v84, %v86
  %v89 = vsub.f32 2.0, %v87
  %v90 = vsub.f32 2.0, %v88
  %v91 = vmul.f32 %v85, %v89
  %v92 = vmul.f32 %v86, %v90
  %v93 = vmul.f32 %v35, %v35
  %v94 = vmul.f32 %v36, %v36
  %v97 = vrot.slane %v93, 2
  %v98 = vrot.slane %v94, 2
  %v101 = vmul.f32 %v67, %v97
  %v102 = vmul.f32 %v68, %v98
  %v103 = vmul.f32 %v55, %v55
  %v104 = vmul.f32 %v56, %v56
  %v107 = vrot.slane %v103, 6
  %v108 = vrot.slane %v104, 6
  %v111 = vmul.f32 %v57, %v107
  %v112 = vmul.f32 %v58, %v108
  %v115 = vrot.slane %v111, 6
  %v116 = vrot.slane %v112, 6
  %v119 = vadd.f32 %v101, %v115
  %v120 = vadd.f32 %v102, %v116
  %v121 = vadd.f32 %v75, %v75
  %v122 = vadd.f32 %v76, %v76
  %v125 = vrot.slane %v55, 2
  %v126 = vrot.slane %v56, 2
  %v129 = vmul.f32 %v35, %v125
  %v130 = vmul.f32 %v36, %v126
  %v133 = vrot.slane %v129, 4
  %v134 = vrot.slane %v130, 4
  %v137 = vmul.f32 %v121, %v133
  %v138 = vmul.f32 %v122, %v134
  %v141 = vrot.slane %v137, 6
  %v142 = vrot.slane %v138, 6
  %v145 = vsub.f32 %v119, %v141
  %v146 = vsub.f32 %v120, %v142
  %v147 = vlog2.pop %v83
  %v148 = vmul.f32 %v147, 0.6931472
  %v149 = vlog2.pop %v84
  %v150 = vmul.f32 %v149, 0.6931472
  %v151 = vmul.f32 %v148, 0.5
  %v152 = vmul.f32 %v150, 0.5
  %v153 = vmul.f32 %v145, 0.5
  %v154 = vmul.f32 %v146, 0.5
  %v157 = vrot.slane %v91, 6
  %v158 = vrot.slane %v92, 6
  %v161 = vmul.f32 %v153, %v157
  %v162 = vmul.f32 %v154, %v158
  %v165 = vrot.slane %v151, 4
  %v166 = vrot.slane %v152, 4
  %v171 = vrot.slane %v161, 4
  %v172 = vrot.slane %v162, 4
  %vm175 = vcmask 1041408
  %v176 = vsel %vm175, %v165, %v171
  %v177 = vsel %vm175, %v166, %v172
  %v178 = vlaneseq
  %v179 = vand.u32 %v178, 127
  %v180 = vadd.s32 %v179, 128
  %vm181 = vcmp.lt.s32.totalorder %v179, 136
  %vm182 = vcmp.lt.s32.totalorder %v180, 136
  %v183 = vsel %vm181, 1, 0
  %v184 = vsel %vm182, 1, 0
  %v185 = vcvt.s32.f32 %v183
  %v186 = vcvt.s32.f32 %v184
  %v187 = vmul.f32 %v176, %v185
  %v188 = vmul.f32 %v177, %v186
  %vm189 = vcmask 1043456
  %v190 = vsel %vm189, %v187, 0.0
  %v191 = vsel %vm189, %v188, 0.0
  %v192 = vadd.f32 %v190, %v191
  %193 = vadd.xlane.f32.xlu0 %v192
  %v194 = vpop.xlane.xlu0 %193
  %v195 = vmul.f32 %v194, 0.007352941
  %vm196 = vcmask 3072
  %197 = vst.msk [vmem:[%s2] sm:$0xf] %vm196, %v195
  // Predicated region
  $region10: #{_face_align_loss_impl.1} parent=0 // pred_check
    _
  $region11: #{_face_align_loss_impl.1} parent=0 // pred_check_branch
    %199 = sbr.rel (0) target = $region13
  $region12: #{_face_align_loss_impl.1} parent=0 // pred_region
    _
  $region13: #{_face_align_loss_impl.1} parent=0 // pred_fallthru
    _
  // Predicated region
  $region14: #{_face_align_loss_impl.1} parent=0 // pred_check
    _
  $region15: #{_face_align_loss_impl.1} parent=0 // pred_check_branch
    %201 = sbr.rel (0) target = $region17
  $region16: #{_face_align_loss_impl.1} parent=0 // pred_region
    _
  $region17: #{_face_align_loss_impl.1} parent=0 // pred_fallthru
    _

</llo_original>
